<compile_context>
chip_gen: v6e
topology: v6e:2x2x1
jax: 0.10.0
libtpu: 0.0.40
codegen_flags: <defaults>
</compile_context>

<pallas_src>
import functools

import jax
import jax.numpy as jnp
from jax.experimental import pallas as pl
from jax.experimental.pallas import tpu as pltpu


# ---------------- Pallas kernels ----------------

def _conv_stats_kernel(wt_ref, at_ref, o_ref, sum_ref, sq_ref):
    # wt: (Cout, K) bf16,  at: (K, TM) bf16  (batch dim squeezed away)
    # o:  (Cout, TM) f32 conv output (no bias; it cancels under BN)
    # sum/sq: (Cout, 1) f32 accumulators, resident across the m ("arbitrary") axis,
    #         one block per batch index on the leading "parallel" axis.
    @pl.when(pl.program_id(1) == 0)
    def _():
        sum_ref[...] = jnp.zeros_like(sum_ref)
        sq_ref[...] = jnp.zeros_like(sq_ref)

    # MXU matmul, f32 accumulation.  Zero-padded M columns stay exactly zero,
    # so they contribute nothing to the statistics -> no padded-column mask.
    acc = jnp.dot(wt_ref[...], at_ref[...], preferred_element_type=jnp.float32)
    o_ref[...] = acc
    sum_ref[...] += jnp.sum(acc, axis=1, keepdims=True)
    sq_ref[...] += jnp.sum(acc * acc, axis=1, keepdims=True)


def _bn_act_kernel(y_ref, scale_ref, shift_ref, o_ref, *, slope):
    # y: (Cout, TM) f32 conv values; single FMA + leaky select in f32 vregs.
    z = y_ref[...] * scale_ref[...] + shift_ref[...]
    o_ref[...] = jnp.where(z >= 0, z, slope * z).astype(o_ref.dtype)


# ---------------- wrapper ----------------

def down_block_bn(x, conv_w, conv_b, gamma, beta, *, stride, padding,
                  eps=1e-5, slope=0.01, tile_m=1024,
                  compute_dtype=jnp.bfloat16):
    """x: (N, Cin, D, H, W) NCDHW.  Returns (N, Cout, Do, Ho, Wo) NCDHW."""
    del conv_b  # conv bias cancels exactly under training-mode BatchNorm.

    N, Cin, D, H, W = x.shape
    Cout, _, kd, kh, kw = conv_w.shape
    sd, sh, sw = stride
    pd, ph, pw = padding
    Do = (D + 2 * pd - kd) // sd + 1
    Ho = (H + 2 * ph - kh) // sh + 1
    Wo = (W + 2 * pw - kw) // sw + 1
    S = Do * Ho * Wo                 # per-batch output pixels (lane axis)
    KK = kd * kh * kw
    K = Cin * KK

    # --- im2col glue (bf16, no transposes: N stays a leading batch axis) ---
    xc = x.astype(compute_dtype)
    xp = jnp.pad(xc, ((0, 0), (0, 0), (pd, pd), (ph, ph), (pw, pw)))
    patches = []
    for dz in range(kd):
        for dy in range(kh):
            for dx in range(kw):
                patches.append(
                    xp[:, :, dz:dz + sd * Do:sd,
                       dy:dy + sh * Ho:sh,
                       dx:dx + sw * Wo:sw])
    p = jnp.stack(patches, axis=2)          # (N, Cin, KK, Do, Ho, Wo)
    At = p.reshape(N, K, S)                 # adjacent-axis merge -> free reshape

    # Pad S up to a multiple of tile_m (padded columns are zeros -> no stat mask).
    lane = 128
    tile_m = max(lane, (int(tile_m) + lane - 1) // lane * lane)
    tile_m = min(tile_m, (S + lane - 1) // lane * lane)
    Sp = (S + tile_m - 1) // tile_m * tile_m
    if Sp != S:
        At = jnp.pad(At, ((0, 0), (0, 0), (0, Sp - S)))

    Wt = conv_w.reshape(Cout, K).astype(compute_dtype)        # (Cout, K)
    gamma2 = gamma.reshape(Cout, 1).astype(jnp.float32)
    beta2 = beta.reshape(Cout, 1).astype(jnp.float32)

    m_tiles = Sp // tile_m
    grid = (N, m_tiles)
    vmem_lim = 32 * 1024 * 1024   # safe on v5e/v6e/v7x for these stripe sizes

    # --- fused kernel 1: conv GEMM + per-batch BN sum / sumsq ---
    conv_t, sum_c, sq_c = pl.pallas_call(
        _conv_stats_kernel,
        out_shape=(jax.ShapeDtypeStruct((N, Cout, Sp), jnp.float32),
                   jax.ShapeDtypeStruct((N, Cout, 1), jnp.float32),
                   jax.ShapeDtypeStruct((N, Cout, 1), jnp.float32)),
        grid_spec=pltpu.PrefetchScalarGridSpec(
            num_scalar_prefetch=0, grid=grid,
            in_specs=[pl.BlockSpec((Cout, K), lambda b, i: (0, 0)),
                      pl.BlockSpec((None, K, tile_m), lambda b, i: (b, 0, i))],
            out_specs=(pl.BlockSpec((None, Cout, tile_m), lambda b, i: (b, 0, i)),
                       pl.BlockSpec((None, Cout, 1), lambda b, i: (b, 0, 0)),
                       pl.BlockSpec((None, Cout, 1), lambda b, i: (b, 0, 0)))),
        compiler_params=pltpu.CompilerParams(
            dimension_semantics=("parallel", "arbitrary"),
            vmem_limit_bytes=vmem_lim),
    )(Wt, At)

    # --- tiny per-channel folding (plain JAX on (Cout, 1) vectors) ---
    inv_m = 1.0 / float(N * S)
    sum_all = jnp.sum(sum_c, axis=0)                          # (Cout, 1)
    sq_all = jnp.sum(sq_c, axis=0)                            # (Cout, 1)
    mean_c = sum_all * inv_m                                  # mean of bias-less conv
    var = jnp.maximum(sq_all * inv_m - mean_c * mean_c, 0.0)  # biased var (training BN)
    scale = gamma2 * jax.lax.rsqrt(var + eps)
    shift = beta2 - mean_c * scale                            # conv bias cancels exactly

    # --- kernel 2: y*scale + shift, leaky_relu(0.01), written in final layout ---
    out_t = pl.pallas_call(
        functools.partial(_bn_act_kernel, slope=slope),
        out_shape=jax.ShapeDtypeStruct((N, Cout, Sp), x.dtype),
        grid_spec=pltpu.PrefetchScalarGridSpec(
            num_scalar_prefetch=0, grid=grid,
            in_specs=[pl.BlockSpec((None, Cout, tile_m), lambda b, i: (b, 0, i)),
                      pl.BlockSpec((Cout, 1), lambda b, i: (0, 0)),
                      pl.BlockSpec((Cout, 1), lambda b, i: (0, 0))],
            out_specs=pl.BlockSpec((None, Cout, tile_m), lambda b, i: (b, 0, i))),
        compiler_params=pltpu.CompilerParams(
            dimension_semantics=("parallel", "parallel"),
            vmem_limit_bytes=vmem_lim),
    )(conv_t, scale, shift)

    # Already in (N, Cout, spatial) order -> pure reshape, no transpose.
    return out_t[:, :, :S].reshape(N, Cout, Do, Ho, Wo)


# ---------------- pure-JAX f32 reference (for correctness check) ----------------

def reference(x, conv_w, conv_b, gamma, beta, *, stride, padding,
              eps=1e-5, slope=0.01):
    y = jax.lax.conv_general_dilated(
        x, conv_w, window_strides=stride,
        padding=[(p, p) for p in padding],
        dimension_numbers=("NCDHW", "OIDHW", "NCDHW"))
    y = y + conv_b[None, :, None, None, None]
    mean = jnp.mean(y, axis=(0, 2, 3, 4), keepdims=True)
    var = jnp.mean((y - mean) ** 2, axis=(0, 2, 3, 4), keepdims=True)
    z = (y - mean) * jax.lax.rsqrt(var + eps)
    z = z * gamma[None, :, None, None, None] + beta[None, :, None, None, None]
    return jnp.where(z >= 0, z, slope * z)


if __name__ == "__main__":
    # DownBlockBN(in_planes=4, out_planes=8, kernel_size=3, stride=2, padding=1)
    N, Cin, Cout = 2, 4, 8
    D = H = W = 14           # S = 7*7*7 = 343 -> exercises S-padding + 2 m-tiles (tile_m=256)
    ks, st, pad = (3, 3, 3), (2, 2, 2), (1, 1, 1)

    key = jax.random.PRNGKey(0)
    kx, kw, kb, kg, kbeta = jax.random.split(key, 5)
    x = jax.random.normal(kx, (N, Cin, D, H, W), dtype=jnp.float32)
    conv_w = 0.1 * jax.random.normal(kw, (Cout, Cin) + ks, dtype=jnp.float32)
    conv_b = 0.1 * jax.random.normal(kb, (Cout,), dtype=jnp.float32)
    gamma = 1.0 + 0.1 * jax.random.normal(kg, (Cout,), dtype=jnp.float32)
    beta = 0.1 * jax.random.normal(kbeta, (Cout,), dtype=jnp.float32)

    out = down_block_bn(x, conv_w, conv_b, gamma, beta, stride=st, padding=pad,
                        tile_m=256)   # small tile only to exercise the m grid in the test
    out = jax.block_until_ready(out)

    ref = reference(x, conv_w, conv_b, gamma, beta, stride=st, padding=pad)
    assert out.shape == ref.shape, (out.shape, ref.shape)
    # bf16 GEMM inputs (f32 accumulation / f32 BN math): tolerance loosened vs f32 ref.
    assert jnp.allclose(out, ref, rtol=5e-2, atol=5e-2), float(
        jnp.max(jnp.abs(out - ref)))

    print("KERNEL_OK")
</pallas_src>

<mosaic_0001>
module attributes {stable_mosaic.version = 11 : i64} {
  func.func @_conv_stats_kernel(%arg0: i32, %arg1: i32, %arg2: memref<8x108xbf16, #tpu.memory_space<vmem>>, %arg3: memref<1x108x256xbf16, #tpu.memory_space<vmem>>, %arg4: memref<1x8x256xf32, #tpu.memory_space<vmem>>, %arg5: memref<1x8x1xf32, #tpu.memory_space<vmem>>, %arg6: memref<1x8x1xf32, #tpu.memory_space<vmem>>) attributes {dimension_semantics = [#tpu.dimension_semantics<parallel>, #tpu.dimension_semantics<arbitrary>], iteration_bounds = array<i64: 2, 2>, scalar_prefetch = 0 : i64, scratch_operands = 0 : i64, tpu.core_type = #tpu.core_type<tc>, window_params = [{pipeline_mode = #tpu.pipeline_mode<synchronous>, transform_indices = @transform_0, window_bounds = array<i64: 8, 108>}, {transform_indices = @transform_1, window_bounds = array<i64: 1, 108, 256>}, {transform_indices = @transform_2, window_bounds = array<i64: 1, 8, 256>}, {transform_indices = @transform_3, window_bounds = array<i64: 1, 8, 1>}, {transform_indices = @transform_4, window_bounds = array<i64: 1, 8, 1>}]} {
    %c0_i32 = arith.constant 0 : i32
    %0 = arith.cmpi eq, %arg1, %c0_i32 : i32
    %1 = arith.extui %0 : i1 to i32
    %c0_i32_0 = arith.constant 0 : i32
    %2 = arith.cmpi ne, %1, %c0_i32_0 : i32
    scf.if %2 {
      %cst_22 = arith.constant 0.000000e+00 : f32
      %27 = vector.broadcast %cst_22 : f32 to vector<8x1xf32>
      %c0_23 = arith.constant 0 : index
      %c0_24 = arith.constant 0 : index
      %c0_25 = arith.constant 0 : index
      %28 = vector.load %arg5[%c0_23, %c0_24, %c0_25] : memref<1x8x1xf32, #tpu.memory_space<vmem>>, vector<1x8x1xf32>
      %29 = vector.shape_cast %28 : vector<1x8x1xf32> to vector<8x1xf32>
      %30 = vector.shape_cast %27 : vector<8x1xf32> to vector<1x8x1xf32>
      tpu.vector_store %arg5[%c0_23, %c0_24, %c0_25], %30 {strides = array<i32>} : memref<1x8x1xf32, #tpu.memory_space<vmem>>, vector<1x8x1xf32>,
      %cst_26 = arith.constant 0.000000e+00 : f32
      %31 = vector.broadcast %cst_26 : f32 to vector<8x1xf32>
      %c0_27 = arith.constant 0 : index
      %c0_28 = arith.constant 0 : index
      %c0_29 = arith.constant 0 : index
      %32 = vector.load %arg6[%c0_27, %c0_28, %c0_29] : memref<1x8x1xf32, #tpu.memory_space<vmem>>, vector<1x8x1xf32>
      %33 = vector.shape_cast %32 : vector<1x8x1xf32> to vector<8x1xf32>
      %34 = vector.shape_cast %31 : vector<8x1xf32> to vector<1x8x1xf32>
      tpu.vector_store %arg6[%c0_27, %c0_28, %c0_29], %34 {strides = array<i32>} : memref<1x8x1xf32, #tpu.memory_space<vmem>>, vector<1x8x1xf32>,
    } else {
    }
    %c0 = arith.constant 0 : index
    %c0_1 = arith.constant 0 : index
    %3 = vector.load %arg2[%c0, %c0_1] : memref<8x108xbf16, #tpu.memory_space<vmem>>, vector<8x108xbf16>
    %c0_2 = arith.constant 0 : index
    %c0_3 = arith.constant 0 : index
    %c0_4 = arith.constant 0 : index
    %4 = vector.load %arg3[%c0_2, %c0_3, %c0_4] : memref<1x108x256xbf16, #tpu.memory_space<vmem>>, vector<1x108x256xbf16>
    %5 = vector.shape_cast %4 : vector<1x108x256xbf16> to vector<108x256xbf16>
    %cst = arith.constant dense<0.000000e+00> : vector<8x256xf32>
    %6 = tpu.matmul %3, %5, %cst {dimension_numbers = #tpu.dot_dimension_numbers<[1], [0], [0], [1], [0, 0, 1, 1], [], []>} : vector<8x108xbf16>, vector<108x256xbf16>, vector<8x256xf32> -> vector<8x256xf32>
    %c0_5 = arith.constant 0 : index
    %c0_6 = arith.constant 0 : index
    %c0_7 = arith.constant 0 : index
    %7 = vector.load %arg4[%c0_5, %c0_6, %c0_7] : memref<1x8x256xf32, #tpu.memory_space<vmem>>, vector<1x8x256xf32>
    %8 = vector.shape_cast %7 : vector<1x8x256xf32> to vector<8x256xf32>
    %9 = vector.shape_cast %6 : vector<8x256xf32> to vector<1x8x256xf32>
    tpu.vector_store %arg4[%c0_5, %c0_6, %c0_7], %9 {strides = array<i32>} : memref<1x8x256xf32, #tpu.memory_space<vmem>>, vector<1x8x256xf32>,
    %c0_8 = arith.constant 0 : index
    %c0_9 = arith.constant 0 : index
    %c0_10 = arith.constant 0 : index
    %10 = vector.load %arg5[%c0_8, %c0_9, %c0_10] : memref<1x8x1xf32, #tpu.memory_space<vmem>>, vector<1x8x1xf32>
    %11 = vector.shape_cast %10 : vector<1x8x1xf32> to vector<8x1xf32>
    %cst_11 = arith.constant dense<0.000000e+00> : vector<8xf32>
    %12 = vector.multi_reduction <add>, %6, %cst_11 [1] : vector<8x256xf32> to vector<8xf32>
    %13 = vector.shape_cast %12 : vector<8xf32> to vector<8x1xf32>
    %14 = arith.addf %11, %13 : vector<8x1xf32>
    %c0_12 = arith.constant 0 : index
    %c0_13 = arith.constant 0 : index
    %c0_14 = arith.constant 0 : index
    %15 = vector.load %arg5[%c0_12, %c0_13, %c0_14] : memref<1x8x1xf32, #tpu.memory_space<vmem>>, vector<1x8x1xf32>
    %16 = vector.shape_cast %15 : vector<1x8x1xf32> to vector<8x1xf32>
    %17 = vector.shape_cast %14 : vector<8x1xf32> to vector<1x8x1xf32>
    tpu.vector_store %arg5[%c0_12, %c0_13, %c0_14], %17 {strides = array<i32>} : memref<1x8x1xf32, #tpu.memory_space<vmem>>, vector<1x8x1xf32>,
    %c0_15 = arith.constant 0 : index
    %c0_16 = arith.constant 0 : index
    %c0_17 = arith.constant 0 : index
    %18 = vector.load %arg6[%c0_15, %c0_16, %c0_17] : memref<1x8x1xf32, #tpu.memory_space<vmem>>, vector<1x8x1xf32>
    %19 = vector.shape_cast %18 : vector<1x8x1xf32> to vector<8x1xf32>
    %20 = arith.mulf %6, %6 : vector<8x256xf32>
    %cst_18 = arith.constant dense<0.000000e+00> : vector<8xf32>
    %21 = vector.multi_reduction <add>, %20, %cst_18 [1] : vector<8x256xf32> to vector<8xf32>
    %22 = vector.shape_cast %21 : vector<8xf32> to vector<8x1xf32>
    %23 = arith.addf %19, %22 : vector<8x1xf32>
    %c0_19 = arith.constant 0 : index
    %c0_20 = arith.constant 0 : index
    %c0_21 = arith.constant 0 : index
    %24 = vector.load %arg6[%c0_19, %c0_20, %c0_21] : memref<1x8x1xf32, #tpu.memory_space<vmem>>, vector<1x8x1xf32>
    %25 = vector.shape_cast %24 : vector<1x8x1xf32> to vector<8x1xf32>
    %26 = vector.shape_cast %23 : vector<8x1xf32> to vector<1x8x1xf32>
    tpu.vector_store %arg6[%c0_19, %c0_20, %c0_21], %26 {strides = array<i32>} : memref<1x8x1xf32, #tpu.memory_space<vmem>>, vector<1x8x1xf32>,
    return
  }
  func.func @transform_0(%arg0: i32, %arg1: i32) -> (i32, i32) {
    %c0_i32 = arith.constant 0 : i32
    %c0_i32_0 = arith.constant 0 : i32
    %c0_i32_1 = arith.constant 0 : i32
    return %c0_i32, %c0_i32_0 : i32, i32
  }
  func.func @transform_1(%arg0: i32, %arg1: i32) -> (i32, i32, i32) {
    %c0_i32 = arith.constant 0 : i32
    %c0_i32_0 = arith.constant 0 : i32
    return %arg0, %c0_i32, %arg1 : i32, i32, i32
  }
  func.func @transform_2(%arg0: i32, %arg1: i32) -> (i32, i32, i32) {
    %c0_i32 = arith.constant 0 : i32
    %c0_i32_0 = arith.constant 0 : i32
    return %arg0, %c0_i32, %arg1 : i32, i32, i32
  }
  func.func @transform_3(%arg0: i32, %arg1: i32) -> (i32, i32, i32) {
    %c0_i32 = arith.constant 0 : i32
    %c0_i32_0 = arith.constant 0 : i32
    %c0_i32_1 = arith.constant 0 : i32
    return %arg0, %c0_i32, %c0_i32_0 : i32, i32, i32
  }
  func.func @transform_4(%arg0: i32, %arg1: i32) -> (i32, i32, i32) {
    %c0_i32 = arith.constant 0 : i32
    %c0_i32_0 = arith.constant 0 : i32
    %c0_i32_1 = arith.constant 0 : i32
    return %arg0, %c0_i32, %c0_i32_0 : i32, i32, i32
  }
}

</mosaic_0001>

<llo_original>
// kernel: tpu_custom_call.1
$region0: #{tpu_custom_call.1}
  #allocation0 [shape = 'u32[]', space=smem, size = 0x4, offset = 0x4, fixed_abs, tag = 'smem constant byte address 0x4 - core index']
  #allocation1 [shape = 'u32[144,128]{1,0:T(1,128)}', space=vmem, size = 0x12000, scoped, tag = 'internal scratch']
  %s0 = inlined_call_operand.vmem [shape: bf16[8,108], index: 0, kind: input, shape index: {}]
  %s1 = inlined_call_operand.vmem [shape: bf16[2,108,512], index: 1, kind: input, shape index: {}]
  %s2 = inlined_call_operand.hbm [shape: f32[2,8,512], index: 2, kind: output, shape index: {0}]
  %s3 = inlined_call_operand.vmem [shape: f32[2,8,1], index: 3, kind: output, shape index: {1}]
  %s4 = inlined_call_operand.vmem [shape: f32[2,8,1], index: 4, kind: output, shape index: {2}]
  %5 = xla_tuple %s2, %s3, %s4
  %s6 = sld [smem:[#allocation0]]
  $region99: #{tpu_custom_call.1} parent=0
    _
  %s8 = ssub.s32 1, %s6
  %s9 = scalar_select 0, %s8, %s6
  $region1: #{tpu_custom_call.1} parent=0
    #allocation2 [shape = 'u8[114688]{0}', space=vmem, size = 0x1c000, scoped, tag = 'input window, operand 1']
    #allocation3 [shape = 'u8[16384]{0}', space=vmem, size = 0x4000, scoped, tag = 'output window, operand 0']
    #allocation4 [shape = 's32[2]{0}', space=sflag, size = 0x8, scoped, tag = 'scoped memory for tpu_custom_call.1']
    %10 = vsyncpa [#allocation4], 0
    %s11 = scalar_lea.sflag [#allocation4], 1
    %12 = vsyncpa %s11, 0
    loop: start=0, step=1, limit=6
    $region2: #{tpu_custom_call.1} parent=1 // loop_pre_header
      _
    $region3: #{tpu_custom_call.1} parent=1 // loop_header
      %s14 = sphi 0, %s18
      %p15 = scmp.ge.s32.totalorder %s14, 6
      %s21 = sphi 0, %s33
      %s22 = sphi 0, %s29
      %s23 = sphi 0, %s21
      %s24 = sphi 0, %s22
      %s25 = sphi 0, %s23
      %s26 = sphi 0, %s24
      %s34 = sphi 0, %s34
      %s36 = sphi 0, %s34
      %s37 = sphi 0, %s36
      %s51 = sphi 0, %s37
      %s59 = sphi 0, %s61
      %s62 = sphi 0, %s59
      %s63 = sphi 0, %s62
      %s79 = sphi 0, %s63
      %s87 = sphi 0, %s89
      %s90 = sphi 0, %s87
      %s91 = sphi 0, %s90
      %s107 = sphi 0, %s91
      %s113 = sphi 0, %s115
      %s116 = sphi 0, %s113
      %s117 = sphi 0, %s116
      %s133 = sphi 0, %s117
      %s139 = sphi 0, %s141
      %s142 = sphi 0, %s139
      %s143 = sphi 0, %s142
      %s159 = sphi 0, %s143
    $region4: #{tpu_custom_call.1} parent=1 // loop_header_branch
      %17 = sbr.rel (%p15) target = $region8
    $region5: #{tpu_custom_call.1} parent=1 // loop_body
      %s19 = ssub.s32 %s14, 1
      %s20 = ssub.s32 %s14, 2
      %s27 = sadd.s32 1, %s22
      %p28 = scmp.ge.s32.totalorder %s27, 2
      %s29 = scalar_select %p28, 0, %s27
      %s30 = sadd.s32 1, %s21
      %s31 = scalar_select %p28, %s30, %s21
      %p32 = scmp.ge.s32.totalorder %s31, 2
      %s33 = scalar_select %p32, 0, %s31
      %s35 = sadd.s32 %s34, 1
      %p38 = scmp.eq.s32.totalorder %s14, 3
      %p39 = scmp.ne.s32.totalorder %s34, %s36
      %p40 = scmp.eq.s32.totalorder %s14, 0
      %p41 = por %p39, %p40
      %p42 = scmp.ne.s32.totalorder %s34, %s36
      %p43 = scmp.eq.s32.totalorder %s19, 3
      %p44 = por %p42, %p43
      %p45 = scmp.ne.s32.totalorder %s36, %s37
      %p46 = scmp.eq.s32.totalorder %s19, 0
      %p47 = por %p45, %p46
      %p48 = scmp.ne.s32.totalorder %s36, %s37
      %p49 = scmp.eq.s32.totalorder %s20, 3
      %p50 = por %p48, %p49
      %p52 = scmp.ne.s32.totalorder %s37, %s51
      %p53 = scmp.eq.s32.totalorder %s20, 0
      %p54 = por %p52, %p53
      %s55 = ssub.s32 %s21, %s33
      %s56 = ssub.s32 %s22, %s29
      %s57 = sor.u32 %s55, %s56
      %p58 = scmp.eq.s32.totalorder %s57, 0
      %s60 = sadd.s32 %s59, 1
      %s61 = scalar_select %p58, %s59, %s60
      %p64 = pneg %p58
      %p65 = scmp.eq.s32.totalorder %s14, 3
      %p66 = por %p64, %p65
      %p67 = scmp.ne.s32.totalorder %s59, %s62
      %p68 = scmp.eq.s32.totalorder %s14, 0
      %p69 = por %p67, %p68
      %p70 = scmp.ne.s32.totalorder %s59, %s62
      %p71 = scmp.eq.s32.totalorder %s19, 3
      %p72 = por %p70, %p71
      %p73 = scmp.ne.s32.totalorder %s62, %s63
      %p74 = scmp.eq.s32.totalorder %s19, 0
      %p75 = por %p73, %p74
      %p76 = scmp.ne.s32.totalorder %s62, %s63
      %p77 = scmp.eq.s32.totalorder %s20, 3
      %p78 = por %p76, %p77
      %p80 = scmp.ne.s32.totalorder %s63, %s79
      %p81 = scmp.eq.s32.totalorder %s20, 0
      %p82 = por %p80, %p81
      %s83 = ssub.s32 %s21, %s33
      %s84 = ssub.s32 %s22, %s29
      %s85 = sor.u32 %s83, %s84
      %p86 = scmp.eq.s32.totalorder %s85, 0
      %s88 = sadd.s32 %s87, 1
      %s89 = scalar_select %p86, %s87, %s88
      %p92 = pneg %p86
      %p93 = scmp.eq.s32.totalorder %s14, 3
      %p94 = por %p92, %p93
      %p95 = scmp.ne.s32.totalorder %s87, %s90
      %p96 = scmp.eq.s32.totalorder %s14, 0
      %p97 = por %p95, %p96
      %p98 = scmp.ne.s32.totalorder %s87, %s90
      %p99 = scmp.eq.s32.totalorder %s19, 3
      %p100 = por %p98, %p99
      %p101 = scmp.ne.s32.totalorder %s90, %s91
      %p102 = scmp.eq.s32.totalorder %s19, 0
      %p103 = por %p101, %p102
      %p104 = scmp.ne.s32.totalorder %s90, %s91
      %p105 = scmp.eq.s32.totalorder %s20, 3
      %p106 = por %p104, %p105
      %p108 = scmp.ne.s32.totalorder %s91, %s107
      %p109 = scmp.eq.s32.totalorder %s20, 0
      %p110 = por %p108, %p109
      %s111 = ssub.s32 %s21, %s33
      %p112 = scmp.eq.s32.totalorder %s111, 0
      %s114 = sadd.s32 %s113, 1
      %s115 = scalar_select %p112, %s113, %s114
      %p118 = pneg %p112
      %p119 = scmp.eq.s32.totalorder %s14, 3
      %p120 = por %p118, %p119
      %p121 = scmp.ne.s32.totalorder %s113, %s116
      %p122 = scmp.eq.s32.totalorder %s14, 0
      %p123 = por %p121, %p122
      %p124 = scmp.ne.s32.totalorder %s113, %s116
      %p125 = scmp.eq.s32.totalorder %s19, 3
      %p126 = por %p124, %p125
      %p127 = scmp.ne.s32.totalorder %s116, %s117
      %p128 = scmp.eq.s32.totalorder %s19, 0
      %p129 = por %p127, %p128
      %p130 = scmp.ne.s32.totalorder %s116, %s117
      %p131 = scmp.eq.s32.totalorder %s20, 3
      %p132 = por %p130, %p131
      %p134 = scmp.ne.s32.totalorder %s117, %s133
      %p135 = scmp.eq.s32.totalorder %s20, 0
      %p136 = por %p134, %p135
      %s137 = ssub.s32 %s21, %s33
      %p138 = scmp.eq.s32.totalorder %s137, 0
      %s140 = sadd.s32 %s139, 1
      %s141 = scalar_select %p138, %s139, %s140
      %p144 = pneg %p138
      %p145 = scmp.eq.s32.totalorder %s14, 3
      %p146 = por %p144, %p145
      %p147 = scmp.ne.s32.totalorder %s139, %s142
      %p148 = scmp.eq.s32.totalorder %s14, 0
      %p149 = por %p147, %p148
      %p150 = scmp.ne.s32.totalorder %s139, %s142
      %p151 = scmp.eq.s32.totalorder %s19, 3
      %p152 = por %p150, %p151
      %p153 = scmp.ne.s32.totalorder %s142, %s143
      %p154 = scmp.eq.s32.totalorder %s19, 0
      %p155 = por %p153, %p154
      %p156 = scmp.ne.s32.totalorder %s142, %s143
      %p157 = scmp.eq.s32.totalorder %s20, 3
      %p158 = por %p156, %p157
      %p160 = scmp.ne.s32.totalorder %s143, %s159
      %p161 = scmp.eq.s32.totalorder %s20, 0
      %p162 = por %p160, %p161
      %p163 = scmp.le.s32.totalorder 1, %s14
      %p164 = scmp.lt.s32.totalorder %s14, 5
      %p165 = pnand %p163, %p164
      %p166 = pneg %p165
      // Predicated region
      $region9: #{tpu_custom_call.1} parent=5 // pred_check
        _
      $region10: #{tpu_custom_call.1} parent=5 // pred_check_branch
        %168 = sbr.rel (%p165) target = $region12
      $region11: #{tpu_custom_call.1} parent=5 // pred_region
        %s169 = ssub.s32 %s14, 1
        // Predicated region
        $region13: #{tpu_custom_call.1} parent=11 // pred_check
          %p170 = pneg %p47
        $region14: #{tpu_custom_call.1} parent=11 // pred_check_branch
          %172 = sbr.rel (%p170) target = $region16
        $region15: #{tpu_custom_call.1} parent=11 // pred_region
          _
        $region16: #{tpu_custom_call.1} parent=11 // pred_fallthru
          _
      $region12: #{tpu_custom_call.1} parent=5 // pred_fallthru
        _
      %p173 = scmp.lt.s32.totalorder %s14, 4
      // Predicated region
      $region17: #{tpu_custom_call.1} parent=5 // pred_check
        %p174 = pneg %p173
      $region18: #{tpu_custom_call.1} parent=5 // pred_check_branch
        %176 = sbr.rel (%p174) target = $region20
      $region19: #{tpu_custom_call.1} parent=5 // pred_region
        // Predicated region
        $region21: #{tpu_custom_call.1} parent=19 // pred_check
          %p177 = pneg %p69
        $region22: #{tpu_custom_call.1} parent=19 // pred_check_branch
          %179 = sbr.rel (%p177) target = $region24
        $region23: #{tpu_custom_call.1} parent=19 // pred_region
          %s180 = sand.u32 %s59, 1
          %s181 = sand.u32 %s59, 1
          %s182 = smul.addr %s181, 112
          %s183 = scalar_lea.vmem [#allocation2], %s182
          %s184 = smul.u32 2, %s22
          %s185 = smul.addr %s21, 56
          %s186 = sadd.s32 %s184, %s185
          %s187 = smul.addr %s186, 4
          %s188 = scalar_lea.vmem %s1, %s187
          // Predicated region
          $region25: #{tpu_custom_call.1} parent=23 // pred_check
            _
          $region26: #{tpu_custom_call.1} parent=23 // pred_check_branch
            %190 = sbr.rel (0) target = $region28
          $region27: #{tpu_custom_call.1} parent=23 // pred_region
            // Predicated region
            $region29: #{tpu_custom_call.1} parent=27 // pred_check
              _
            $region30: #{tpu_custom_call.1} parent=27 // pred_check_branch
              %192 = sbr.rel (0) target = $region32
            $region31: #{tpu_custom_call.1} parent=27 // pred_region
              // Predicated region
              $region44: #{tpu_custom_call.1} parent=31 // pred_check
                _
              $region45: #{tpu_custom_call.1} parent=31 // pred_check_branch
                %234 = sbr.rel (0) target = $region47
              $region46: #{tpu_custom_call.1} parent=31 // pred_region
                loop: start=0, step=1, limit=1
                $region48: #{tpu_custom_call.1} parent=46 // loop_pre_header
                  _
                $region49: #{tpu_custom_call.1} parent=46 // loop_header
                  %s236 = sphi 0, %s240
                  %p237 = scmp.ge.s32.totalorder %s236, 1
                  %s241 = sphi %s188, %s188
                  %s242 = sphi %s183, %s183
                $region50: #{tpu_custom_call.1} parent=46 // loop_header_branch
                  %239 = sbr.rel (%p237) target = $region54
                $region51: #{tpu_custom_call.1} parent=46 // loop_body
                  %v243 = vld [vmem:[%s241] sm:$0xff]
                  %244 = vst [vmem:[%s242] sm:$0xff] %v243
                  %v245 = vld [vmem:[%s241 + $0x10] sm:$0xff]
                  %246 = vst [vmem:[%s242 + $0x8] sm:$0xff] %v245
                  %v247 = vld [vmem:[%s241 + $0x20] sm:$0xff]
                  %248 = vst [vmem:[%s242 + $0x10] sm:$0xff] %v247
                  %v249 = vld [vmem:[%s241 + $0x30] sm:$0xff]
                  %250 = vst [vmem:[%s242 + $0x18] sm:$0xff] %v249
                  %v251 = vld [vmem:[%s241 + $0x40] sm:$0xff]
                  %252 = vst [vmem:[%s242 + $0x20] sm:$0xff] %v251
                  %v253 = vld [vmem:[%s241 + $0x50] sm:$0xff]
                  %254 = vst [vmem:[%s242 + $0x28] sm:$0xff] %v253
                  %v255 = vld [vmem:[%s241 + $0x60] sm:$0xff]
                  %256 = vst [vmem:[%s242 + $0x30] sm:$0xff] %v255
                  %v257 = vld [vmem:[%s241 + $0x70] sm:$0xff]
                  %258 = vst [vmem:[%s242 + $0x38] sm:$0xff] %v257
                  %v259 = vld [vmem:[%s241 + $0x80] sm:$0xff]
                  %260 = vst [vmem:[%s242 + $0x40] sm:$0xff] %v259
                  %v261 = vld [vmem:[%s241 + $0x90] sm:$0xff]
                  %262 = vst [vmem:[%s242 + $0x48] sm:$0xff] %v261
                  %v263 = vld [vmem:[%s241 + $0xa0] sm:$0xff]
                  %264 = vst [vmem:[%s242 + $0x50] sm:$0xff] %v263
                  %v265 = vld [vmem:[%s241 + $0xb0] sm:$0xff]
                  %266 = vst [vmem:[%s242 + $0x58] sm:$0xff] %v265
                  %v267 = vld [vmem:[%s241 + $0xc0] sm:$0xff]
                  %268 = vst [vmem:[%s242 + $0x60] sm:$0xff] %v267
                  %v269 = vld [vmem:[%s241 + $0xd0] sm:$0xff]
                  %270 = vst [vmem:[%s242 + $0x68] sm:$0xff] %v269
                $region52: #{tpu_custom_call.1} parent=46 // loop_footer
                  %s240 = sadd.s32 1, %s236
                $region53: #{tpu_custom_call.1} parent=46 // loop_footer_branch
                  %235 = sbr.rel target = $region49
                $region54: #{tpu_custom_call.1} parent=46 // loop_exit
                  _
              $region47: #{tpu_custom_call.1} parent=31 // pred_fallthru
                _
              // Predicated region
              $region55: #{tpu_custom_call.1} parent=31 // pred_check
                _
              $region56: #{tpu_custom_call.1} parent=31 // pred_check_branch
                %272 = sbr.rel target = $region58
              $region57: #{tpu_custom_call.1} parent=31 // pred_region
                _
              $region58: #{tpu_custom_call.1} parent=31 // pred_fallthru
                _
            $region32: #{tpu_custom_call.1} parent=27 // pred_fallthru
              _
            // Predicated region
            $region33: #{tpu_custom_call.1} parent=27 // pred_check
              _
            $region34: #{tpu_custom_call.1} parent=27 // pred_check_branch
              %194 = sbr.rel target = $region36
            $region35: #{tpu_custom_call.1} parent=27 // pred_region
              %s196 = ssub.s32 256, 1
              loop: start=0, step=1, limit=1
              $region37: #{tpu_custom_call.1} parent=35 // loop_pre_header
                _
              $region38: #{tpu_custom_call.1} parent=35 // loop_header
                %s198 = sphi 0, %s202
                %p199 = scmp.ge.s32.totalorder %s198, 1
                %s203 = sphi %s188, %s188
                %s204 = sphi %s183, %s183
              $region39: #{tpu_custom_call.1} parent=35 // loop_header_branch
                %201 = sbr.rel (%p199) target = $region43
              $region40: #{tpu_custom_call.1} parent=35 // loop_body
                %v205 = vld [vmem:[%s203] sm:%s196]
                %206 = vst [vmem:[%s204] sm:%s196] %v205
                %v207 = vld [vmem:[%s203 + $0x10] sm:%s196]
                %208 = vst [vmem:[%s204 + $0x8] sm:%s196] %v207
                %v209 = vld [vmem:[%s203 + $0x20] sm:%s196]
                %210 = vst [vmem:[%s204 + $0x10] sm:%s196] %v209
                %v211 = vld [vmem:[%s203 + $0x30] sm:%s196]
                %212 = vst [vmem:[%s204 + $0x18] sm:%s196] %v211
                %v213 = vld [vmem:[%s203 + $0x40] sm:%s196]
                %214 = vst [vmem:[%s204 + $0x20] sm:%s196] %v213
                %v215 = vld [vmem:[%s203 + $0x50] sm:%s196]
                %216 = vst [vmem:[%s204 + $0x28] sm:%s196] %v215
                %v217 = vld [vmem:[%s203 + $0x60] sm:%s196]
                %218 = vst [vmem:[%s204 + $0x30] sm:%s196] %v217
                %v219 = vld [vmem:[%s203 + $0x70] sm:%s196]
                %220 = vst [vmem:[%s204 + $0x38] sm:%s196] %v219
                %v221 = vld [vmem:[%s203 + $0x80] sm:%s196]
                %222 = vst [vmem:[%s204 + $0x40] sm:%s196] %v221
                %v223 = vld [vmem:[%s203 + $0x90] sm:%s196]
                %224 = vst [vmem:[%s204 + $0x48] sm:%s196] %v223
                %v225 = vld [vmem:[%s203 + $0xa0] sm:%s196]
                %226 = vst [vmem:[%s204 + $0x50] sm:%s196] %v225
                %v227 = vld [vmem:[%s203 + $0xb0] sm:%s196]
                %228 = vst [vmem:[%s204 + $0x58] sm:%s196] %v227
                %v229 = vld [vmem:[%s203 + $0xc0] sm:%s196]
                %230 = vst [vmem:[%s204 + $0x60] sm:%s196] %v229
                %v231 = vld [vmem:[%s203 + $0xd0] sm:%s196]
                %232 = vst [vmem:[%s204 + $0x68] sm:%s196] %v231
              $region41: #{tpu_custom_call.1} parent=35 // loop_footer
                %s202 = sadd.s32 1, %s198
              $region42: #{tpu_custom_call.1} parent=35 // loop_footer_branch
                %197 = sbr.rel target = $region38
              $region43: #{tpu_custom_call.1} parent=35 // loop_exit
                _
            $region36: #{tpu_custom_call.1} parent=27 // pred_fallthru
              _
          $region28: #{tpu_custom_call.1} parent=23 // pred_fallthru
            _
          %273 = vnop
        $region24: #{tpu_custom_call.1} parent=19 // pred_fallthru
          _
      $region20: #{tpu_custom_call.1} parent=5 // pred_fallthru
        _
      %p274 = scmp.le.s32.totalorder 1, %s14
      %p275 = scmp.lt.s32.totalorder %s14, 5
      %p276 = pnand %p274, %p275
      %p277 = pneg %p276
      // Predicated region
      $region59: #{tpu_custom_call.1} parent=5 // pred_check
        _
      $region60: #{tpu_custom_call.1} parent=5 // pred_check_branch
        %279 = sbr.rel (%p276) target = $region62
      $region61: #{tpu_custom_call.1} parent=5 // pred_region
        %s280 = ssub.s32 %s14, 1
        %s281 = sand.u32 %s62, 1
        %s282 = sand.u32 %s62, 1
        %s283 = smul.addr %s282, 112
        %s284 = scalar_lea.vmem [#allocation2], %s283
        // Predicated region
        $region63: #{tpu_custom_call.1} parent=61 // pred_check
          %p285 = pneg %p75
        $region64: #{tpu_custom_call.1} parent=61 // pred_check_branch
          %287 = sbr.rel (%p285) target = $region66
        $region65: #{tpu_custom_call.1} parent=61 // pred_region
          _
        $region66: #{tpu_custom_call.1} parent=61 // pred_fallthru
          _
        %p288 = pneg %p47
        %p289 = pneg %p44
        %s290 = sand.u32 %s62, 1
        %s291 = sand.u32 %s62, 1
        %s292 = smul.addr %s291, 112
        %s293 = scalar_lea.vmem [#allocation2], %s292
        %p294 = pneg %p75
        %p295 = pneg %p72
        %p296 = pneg %p103
        %p297 = pneg %p100
        %s298 = sand.u32 %s90, 1
        %s299 = scalar_lea.sflag [#allocation4], %s298
        %s300 = sand.u32 %s90, 1
        %s301 = smul.addr %s300, 16
        %s302 = scalar_lea.vmem [#allocation3], %s301
        %p303 = pneg %p129
        %p304 = pneg %p126
        %p305 = scmp.lt.s32.totalorder %s23, 1
        %s306 = scalar_select %p305, %s23, 1
        %s307 = smul.addr %s306, 8
        %s308 = scalar_lea.vmem %s3, %s307
        %p309 = pneg %p155
        %p310 = pneg %p152
        %p311 = scmp.lt.s32.totalorder %s23, 1
        %s312 = scalar_select %p311, %s23, 1
        %s313 = smul.addr %s312, 8
        %s314 = scalar_lea.vmem %s4, %s313
        %s315 = smul.u32 2, %s24
        %s316 = smul.u32 2, %s24
        %p317 = scmp.lt.s32.totalorder %s23, 1
        %s318 = scalar_select %p317, %s23, 1
        %s319 = smul.addr %s318, 8
        %s320 = scalar_lea.vmem %s3, %s319
        %p321 = scmp.lt.s32.totalorder %s23, 1
        %s322 = scalar_select %p321, %s23, 1
        %s323 = smul.addr %s322, 8
        %s324 = scalar_lea.vmem %s4, %s323
        %p326 = scmp.eq.s32.totalorder %s24, 0
        // Predicated region
        $region67: #{tpu_custom_call.1} parent=61 // pred_check
          %p327 = pneg %p326
        $region68: #{tpu_custom_call.1} parent=61 // pred_check_branch
          %329 = sbr.rel (%p327) target = $region70
        $region69: #{tpu_custom_call.1} parent=61 // pred_region
          %vm330 = vcmask 7168
          %331 = vst.msk [vmem:[%s320] sm:$0xff] %vm330, 0.0
          %332 = vst.msk [vmem:[%s324] sm:$0xff] %vm330, 0.0
        $region70: #{tpu_custom_call.1} parent=61 // pred_fallthru
          _
        %v333 = vld [vmem:[%s0] sm:$0xf]
        %v334 = vld [vmem:[%s284] sm:$0xff]
        %v335 = vld [vmem:[%s284 + $0x8] sm:$0xff]
        %v336 = vld [vmem:[%s284 + $0x10] sm:$0xff]
        %v337 = vld [vmem:[%s284 + $0x18] sm:$0xff]
        %v338 = vld [vmem:[%s284 + $0x20] sm:$0xff]
        %v339 = vld [vmem:[%s284 + $0x28] sm:$0xff]
        %v340 = vld [vmem:[%s284 + $0x30] sm:$0xff]
        %v341 = vld [vmem:[%s284 + $0x38] sm:$0xff]
        %v342 = vld [vmem:[%s284 + $0x40] sm:$0xff]
        %v343 = vld [vmem:[%s284 + $0x48] sm:$0xff]
        %v344 = vld [vmem:[%s284 + $0x50] sm:$0xff]
        %v345 = vld [vmem:[%s284 + $0x58] sm:$0xff]
        %v346 = vld [vmem:[%s284 + $0x60] sm:$0xff]
        %v347 = vld [vmem:[%s284 + $0x68] sm:$0x33]
        %v362 = vunpack.c.l.b16 %v334
        %v363 = vunpack.c.h.b16 %v334
        %v364 = vunpack.c.l.b16 %v335
        %v365 = vunpack.c.h.b16 %v335
        %v366 = vunpack.c.l.b16 %v336
        %v367 = vunpack.c.h.b16 %v336
        %v368 = vunpack.c.l.b16 %v337
        %v369 = vunpack.c.h.b16 %v337
        %v370 = vunpack.c.l.b16 %v338
        %v371 = vunpack.c.h.b16 %v338
        %v372 = vunpack.c.l.b16 %v339
        %v373 = vunpack.c.h.b16 %v339
        %v374 = vunpack.c.l.b16 %v340
        %v375 = vunpack.c.h.b16 %v340
        %v376 = vunpack.c.l.b16 %v341
        %v377 = vunpack.c.h.b16 %v341
        %v378 = vunpack.c.l.b16 %v342
        %v379 = vunpack.c.h.b16 %v342
        %v380 = vunpack.c.l.b16 %v343
        %v381 = vunpack.c.h.b16 %v343
        %v382 = vunpack.c.l.b16 %v344
        %v383 = vunpack.c.h.b16 %v344
        %v384 = vunpack.c.l.b16 %v345
        %v385 = vunpack.c.h.b16 %v345
        %v386 = vunpack.c.l.b16 %v346
        %v387 = vunpack.c.h.b16 %v346
        %v388 = vunpack.c.l.b16 %v347
        %v389 = vunpack.c.h.b16 %v347
        %v390 = vpack.c.b16 %v364, %v362
        %v391 = vpack.c.b16 %v365, %v363
        %v392 = vpack.c.b16 %v368, %v366
        %v393 = vpack.c.b16 %v369, %v367
        %v394 = vpack.c.b16 %v372, %v370
        %v395 = vpack.c.b16 %v373, %v371
        %v396 = vpack.c.b16 %v376, %v374
        %v397 = vpack.c.b16 %v377, %v375
        %v398 = vpack.c.b16 %v380, %v378
        %v399 = vpack.c.b16 %v381, %v379
        %v400 = vpack.c.b16 %v384, %v382
        %v401 = vpack.c.b16 %v385, %v383
        %v402 = vpack.c.b16 %v388, %v386
        %v403 = vpack.c.b16 %v389, %v387
        %vm416 = vcmask 883712
        %v418 = vsel %vm416, %v333, 0
        %vm420 = vcmask 1045504
        %v422 = vsel %vm420, %v402, 0
        %v425 = vsel %vm420, %v403, 0
        %427 = vmatprep.subr.bf16.mxu0 0
        %428 = vmatpush1.bf16.msra.mxu0 0
        %429 = vmatprep.subr.bf16.mxu0 %v425
        %430 = vmatpush1.bf16.msra.mxu0 %v422
        %431 = vmatprep.subr.bf16.mxu0 %v401
        %432 = vmatpush1.bf16.msra.mxu0 %v400
        %433 = vmatprep.subr.bf16.mxu0 %v399
        %434 = vmatpush1.bf16.msra.mxu0 %v398
        %435 = vmatprep.subr.bf16.mxu0 %v397
        %436 = vmatpush1.bf16.msra.mxu0 %v396
        %437 = vmatprep.subr.bf16.mxu0 %v395
        %438 = vmatpush1.bf16.msra.mxu0 %v394
        %439 = vmatprep.subr.bf16.mxu0 %v393
        %440 = vmatpush1.bf16.msra.mxu0 %v392
        %441 = vmatprep.subr.bf16.mxu0 %v391
        %442 = vmatpush1.bf16.msra.mxu0 %v390
        %443 = vmatprep.subr.bf16.mxu0 0
        %444 = vmatpush2.bf16.msra.mxu0 0
        %445 = vmatprep.subr.bf16.mxu0 0
        %446 = vmatpush2.bf16.msra.mxu0 0
        %447 = vmatprep.subr.bf16.mxu0 0
        %448 = vmatpush2.bf16.msra.mxu0 0
        %449 = vmatprep.subr.bf16.mxu0 0
        %450 = vmatpush2.bf16.msra.mxu0 0
        %451 = vmatprep.subr.bf16.mxu0 0
        %452 = vmatpush2.bf16.msra.mxu0 0
        %453 = vmatprep.subr.bf16.mxu0 0
        %454 = vmatpush2.bf16.msra.mxu0 0
        %455 = vmatprep.subr.bf16.mxu0 0
        %456 = vmatpush2.bf16.msra.mxu0 0
        %457 = vmatprep.subr.bf16.mxu0 0
        %458 = vmatpush2.bf16.msra.mxu0 0
        %459 = vmatprep.mubr.bf16.mxu0 0
        %460 = vmatmul.mubr.bf16.gmra.mxu0 %v418
        %v461 = vpop.f32.mrf.mxu0
        %v462 = vadd.f32 0.0, %v461
        %v463 = vpop.f32.mrf.mxu0
        %v464 = vadd.f32 0.0, %v463
        %v465 = vpop.f32.mrf.mxu0
        %v466 = vpop.f32.mrf.mxu0
        %467 = vdwg.mxu0
        %468 = vst [vmem:[%s302] sm:$0xff] %v462
        %469 = vst [vmem:[%s302 + $0x8] sm:$0xff] %v464
        %v470 = vld [vmem:[%s320] sm:$0xff]
        %v471 = vadd.f32 %v462, %v464
        %472 = vadd.xlane.f32.xlu0 %v471
        %v473 = vpop.xlane.xlu0 %472
        %v474 = vadd.f32 %v470, %v473
        %vm475 = vcmask 7168
        %476 = vst.msk [vmem:[%s320] sm:$0xff] %vm475, %v474
        %v477 = vld [vmem:[%s324] sm:$0xff]
        %v478 = vmul.f32 %v462, %v462
        %v479 = vmul.f32 %v464, %v464
        %v480 = vadd.f32 %v478, %v479
        %481 = vadd.xlane.f32.xlu0 %v480
        %v482 = vpop.xlane.xlu0 %481
        %v483 = vadd.f32 %v477, %v482
        %484 = vst.msk [vmem:[%s324] sm:$0xff] %vm475, %v483
        %s485 = sand.u32 %s90, 1
        %s486 = scalar_lea.sflag [#allocation4], %s485
        %s487 = sand.u32 %s90, 1
        %s488 = smul.addr %s487, 16
        %s489 = scalar_lea.vmem [#allocation3], %s488
        %p490 = scmp.lt.s32.totalorder %s23, 1
        %s491 = scalar_select %p490, %s23, 1
        %s492 = smul.addr %s491, 8
        %s493 = scalar_lea.vmem %s3, %s492
        %p494 = scmp.lt.s32.totalorder %s23, 1
        %s495 = scalar_select %p494, %s23, 1
        %s496 = smul.addr %s495, 8
        %s497 = scalar_lea.vmem %s4, %s496
        // Predicated region
        $region71: #{tpu_custom_call.1} parent=61 // pred_check
          %p498 = pneg %p100
        $region72: #{tpu_custom_call.1} parent=61 // pred_check_branch
          %500 = sbr.rel (%p498) target = $region74
        $region73: #{tpu_custom_call.1} parent=61 // pred_region
          %s501 = smul.u32 2, %s24
          %s503 = ssub.s32 256, 256
          %504 = vsyncadd %s486, %s503
          %s505 = smul.addr %s23, 4
          %s506 = sadd.s32 %s501, %s505
          %s507 = smul.addr %s506, 128
          %s508 = scalar_lea.hbm %s2, %s507
          %s510 = sshll.u32 %s489, 4
          %s511 = int_to_ptr.vmem [resolvable:$true] %s510
          %513 = dma.vmem_to_hbm [thread:$0]  %s511, 256, %s508, %s486
        $region74: #{tpu_custom_call.1} parent=61 // pred_fallthru
          _
        // Predicated region
        $region75: #{tpu_custom_call.1} parent=61 // pred_check
          %p514 = pneg %p126
        $region76: #{tpu_custom_call.1} parent=61 // pred_check_branch
          %516 = sbr.rel (%p514) target = $region78
        $region77: #{tpu_custom_call.1} parent=61 // pred_region
          _
        $region78: #{tpu_custom_call.1} parent=61 // pred_fallthru
          _
        // Predicated region
        $region79: #{tpu_custom_call.1} parent=61 // pred_check
          %p517 = pneg %p152
        $region80: #{tpu_custom_call.1} parent=61 // pred_check_branch
          %519 = sbr.rel (%p517) target = $region82
        $region81: #{tpu_custom_call.1} parent=61 // pred_region
          _
        $region82: #{tpu_custom_call.1} parent=61 // pred_fallthru
          _
      $region62: #{tpu_custom_call.1} parent=5 // pred_fallthru
        _
      %p520 = scmp.le.s32.totalorder 2, %s14
      // Predicated region
      $region83: #{tpu_custom_call.1} parent=5 // pred_check
        %p521 = pneg %p520
      $region84: #{tpu_custom_call.1} parent=5 // pred_check_branch
        %523 = sbr.rel (%p521) target = $region86
      $region85: #{tpu_custom_call.1} parent=5 // pred_region
        %s524 = ssub.s32 %s14, 2
        // Predicated region
        $region87: #{tpu_custom_call.1} parent=85 // pred_check
          %p525 = pneg %p106
        $region88: #{tpu_custom_call.1} parent=85 // pred_check_branch
          %527 = sbr.rel (%p525) target = $region90
        $region89: #{tpu_custom_call.1} parent=85 // pred_region
          %s528 = sand.u32 %s91, 1
          %s529 = scalar_lea.sflag [#allocation4], %s528
          %s530 = sand.u32 %s91, 1
          %s531 = smul.addr %s530, 16
          %s532 = scalar_lea.vmem [#allocation3], %s531
          %533 = dma.done %s529, 256
        $region90: #{tpu_custom_call.1} parent=85 // pred_fallthru
          _
        // Predicated region
        $region91: #{tpu_custom_call.1} parent=85 // pred_check
          %p534 = pneg %p132
        $region92: #{tpu_custom_call.1} parent=85 // pred_check_branch
          %536 = sbr.rel (%p534) target = $region94
        $region93: #{tpu_custom_call.1} parent=85 // pred_region
          %p537 = scmp.lt.s32.totalorder %s25, 1
          %s538 = scalar_select %p537, %s25, 1
          %s539 = smul.addr %s538, 8
          %s540 = scalar_lea.vmem %s3, %s539
        $region94: #{tpu_custom_call.1} parent=85 // pred_fallthru
          _
        // Predicated region
        $region95: #{tpu_custom_call.1} parent=85 // pred_check
          %p541 = pneg %p158
        $region96: #{tpu_custom_call.1} parent=85 // pred_check_branch
          %543 = sbr.rel (%p541) target = $region98
        $region97: #{tpu_custom_call.1} parent=85 // pred_region
          %p544 = scmp.lt.s32.totalorder %s25, 1
          %s545 = scalar_select %p544, %s25, 1
          %s546 = smul.addr %s545, 8
          %s547 = scalar_lea.vmem %s4, %s546
        $region98: #{tpu_custom_call.1} parent=85 // pred_fallthru
          _
      $region86: #{tpu_custom_call.1} parent=5 // pred_fallthru
        _
    $region6: #{tpu_custom_call.1} parent=1 // loop_footer
      %s18 = sadd.s32 1, %s14
    $region7: #{tpu_custom_call.1} parent=1 // loop_footer_branch
      %13 = sbr.rel target = $region3
    $region8: #{tpu_custom_call.1} parent=1 // loop_exit
      _
    %548 = vsyncpa [#allocation4], 1
    %s549 = scalar_lea.sflag [#allocation4], 1
    %550 = vsyncpa %s549, 1

</llo_original>
